<compile_context>
chip_gen: v7x
topology: tpu7x:2x2x1
jax: 0.10.0
libtpu: 0.0.40
codegen_flags: <defaults>
</compile_context>

<pallas_src>
import functools

import jax
import jax.numpy as jnp
from jax.experimental import pallas as pl
from jax.experimental.pallas import tpu as pltpu


# ----------------------------------------------------------------------------
# Kernels
# ----------------------------------------------------------------------------

def _ffn_kernel_single_k(x_ref, w1_ref, b1_ref, w2_ref, b2_ref, o_ref):
    """Weight-resident fast path: the whole d_ff axis is a single block.

    Grid: (row tiles,).  Weight block indices never change, so w1/b1/w2/b2 are
    DMA'd once and stay resident across every row tile.  No accumulator
    scratch: the result is written straight to o_ref.
    """
    h = jnp.dot(x_ref[...], w1_ref[...], preferred_element_type=jnp.float32)
    # Bias + ReLU on the VPU.  Dropout is identity in eval mode.
    h = jnp.maximum(h + b1_ref[...].astype(jnp.float32), 0.0)
    out = jnp.dot(h.astype(w2_ref.dtype), w2_ref[...],
                  preferred_element_type=jnp.float32)
    o_ref[...] = (out + b2_ref[...].astype(jnp.float32)).astype(o_ref.dtype)


def _ffn_kernel_multi_k(x_ref, w1_ref, b1_ref, w2_ref, b2_ref, o_ref, acc_ref,
                        *, d_ff, tk, ragged):
    """Tiled-d_ff path.  Grid: (row tiles, d_ff tiles).

    Per step:
      x_ref:  [tm, dim]   w1_ref: [dim, tk]   b1_ref: [1, tk]
      w2_ref: [tk, dim]   b2_ref: [1, dim]
      o_ref:  [tm, dim]   acc_ref:[tm, dim] f32 (resident across k)

    If `ragged` (d_ff % tk != 0) the last chunk's out-of-bounds padding in
    w1/b1/w2 is neutralized by zero-masking the tail columns of h and the tail
    rows of w2 before the second matmul.
    """
    k = pl.program_id(1)

    @pl.when(k == 0)
    def _():
        acc_ref[...] = jnp.zeros_like(acc_ref)

    # Linear 1 chunk on the MXU (native dtype operands, f32 accumulate).
    h = jnp.dot(x_ref[...], w1_ref[...], preferred_element_type=jnp.float32)
    h = jnp.maximum(h + b1_ref[...].astype(jnp.float32), 0.0)

    w2v = w2_ref[...]
    if ragged:  # static: only emitted when d_ff % tk != 0
        valid = d_ff - k * tk  # == tk except on the last chunk
        col_ids = jax.lax.broadcasted_iota(jnp.int32, h.shape, 1)
        h = jnp.where(col_ids < valid, h, 0.0)
        row_ids = jax.lax.broadcasted_iota(jnp.int32, w2v.shape, 0)
        w2v = jnp.where(row_ids < valid, w2v, jnp.zeros_like(w2v))

    # Linear 2 partial product, accumulated into the f32 scratch.
    acc_ref[...] += jnp.dot(h.astype(w2v.dtype), w2v,
                            preferred_element_type=jnp.float32)

    @pl.when(k == pl.num_programs(1) - 1)
    def _():
        o_ref[...] = (acc_ref[...] + b2_ref[...].astype(jnp.float32)
                      ).astype(o_ref.dtype)


# ----------------------------------------------------------------------------
# Tiling heuristics
# ----------------------------------------------------------------------------

def _cdiv(a, b):
    return -(-a // b)


def _round_up(n, m):
    return ((n + m - 1) // m) * m


def _tpu_generation():
    try:
        kind = jax.devices()[0].device_kind.lower()
    except Exception:
        return 0
    for g in (7, 6, 5, 4, 3, 2):
        if ("v%d" % g) in kind or ("tpu%d" % g) in kind:
            return g
    return 0


def _vmem_budget_and_align():
    """(usable VMEM budget bytes, MXU lane alignment for tk, generation)."""
    gen = _tpu_generation()
    cap = None
    try:
        info = pltpu.get_tpu_info()
        cap = int(getattr(info, "vmem_capacity_bytes", 0)) or None
    except Exception:
        cap = None
    if cap is None:
        # v7x has 64 MiB per TensorCore; v5e/v6e have 128 MiB.  Unknown -> be
        # conservative (assume the smaller v7x VMEM).
        cap = (64 << 20) if (gen >= 7 or gen == 0) else (128 << 20)
    if cap <= (64 << 20):
        budget = cap - (10 << 20)                 # ~54 MiB usable on v7x
    else:
        budget = min(cap - (16 << 20), 112 << 20)  # ~112 MiB on v5e/v6e
    budget = max(budget, 32 << 20)
    lane_align = 128 if gen == 5 else 256          # v6e/v7x MXU is 2x256x256
    return budget, lane_align, gen


def _footprint_bytes(tm, tk, dim, isz_x, isz_w, isz_out, single_k):
    """Rough VMEM footprint of one tiling choice (double-buffered I/O tiles,
    f32 intermediates, accumulator scratch, bf16 cast copy of h)."""
    f = 2 * tm * dim * isz_x          # x tile
    f += 2 * dim * tk * isz_w         # w1 tile
    f += 2 * tk * isz_w               # b1 chunk
    f += 2 * tk * dim * isz_w         # w2 tile
    f += 2 * dim * isz_w              # b2
    f += 2 * tm * dim * isz_out       # out tile
    f += tm * tk * 4                  # h (f32)
    f += tm * tk * isz_w              # h cast copy feeding the second matmul
    if not single_k:
        f += tm * dim * 4             # f32 accumulator scratch
    return f


def _select_tiles(n_rows, dim, d_ff, isz_x, isz_w, isz_out, sub,
                  tm_req, tk_cap_req, budget, lane_align, gen):
    """Pick (tm, tk, single_k) that fits the per-generation VMEM budget."""

    def fits(tm_, tk_, single_):
        return _footprint_bytes(tm_, tk_, dim, isz_x, isz_w, isz_out,
                                single_) <= budget

    # Row tile: generation-aware default, rounded to the dtype sublane
    # multiple, never larger than the (rounded-up) token count.
    if tm_req is not None:
        tm = _round_up(min(max(tm_req, sub), _round_up(n_rows, sub)), sub)
    else:
        tm_default = 384 if gen >= 7 else (768 if gen == 6 else
                                           (512 if gen == 5 else 384))
        tm = _round_up(min(tm_default, _round_up(n_rows, sub)), sub)

    # v7x has two TensorCores: make sure the parallel row axis has >= 2 tiles.
    if gen >= 7 and n_rows > sub and _cdiv(n_rows, tm) == 1:
        tm = _round_up(_cdiv(n_rows, 2), sub)

    allow_single = (tk_cap_req is None) or (tk_cap_req >= d_ff)
    if tk_cap_req is None:
        tk_cap = d_ff
    else:
        tk_cap = min(max(tk_cap_req, min(128, d_ff)), d_ff)

    while True:
        # (a) Weight-resident single-k: whole d_ff in one block.
        if allow_single and fits(tm, d_ff, True):
            return tm, d_ff, True

        # (b) Tiled d_ff: biggest MXU-aligned chunk (<= 1024) that fits; fall
        #     back to 128-aligned if no 256-aligned chunk exists/fits.
        cap = min(tk_cap, 1024)
        tk_pick = None
        for step in (lane_align, 128):
            cand = (cap // step) * step
            while cand >= step:
                if fits(tm, cand, False):
                    tk_pick = cand
                    break
                cand -= step
            if tk_pick is not None:
                break
        if tk_pick is not None:
            return tm, tk_pick, False

        # (c) d_ff smaller than the alignment: use the full axis if it fits.
        if fits(tm, d_ff, allow_single):
            return tm, d_ff, allow_single

        # (d) Nothing fits at this row tile -> shrink it and retry.
        if tm <= sub:
            tk = d_ff if d_ff <= 128 else 128
            return tm, tk, (tk == d_ff and allow_single)
        tm = _round_up(max(tm // 2, sub), sub)


# ----------------------------------------------------------------------------
# Wrapper
# ----------------------------------------------------------------------------

@functools.partial(
    jax.jit,
    static_argnames=("tm", "tk_ff", "dropout_rate", "training",
                     "prefer_bf16_matmul"))
def feed_forward(x, w1, b1, w2, b2, *, tm=None, tk_ff=None,
                 dropout_rate=0.1, training=False, prefer_bf16_matmul=False):
    """Fused MLP: x @ w1 + b1 -> ReLU -> (dropout: eval identity) -> @ w2 + b2.

    x: [..., dim], w1: [dim, d_ff], b1: [d_ff], w2: [d_ff, dim], b2: [dim].
    tm / tk_ff are optional overrides; by default tiles are derived from the
    TPU generation's VMEM budget and MXU shape.
    """
    if training and dropout_rate > 0.0:
        # TODO(synk): training-mode dropout not implemented in the kernel.
        raise NotImplementedError("feed_forward only supports eval-mode dropout")

    orig_shape = x.shape
    dim = orig_shape[-1]
    d_ff = w1.shape[1]
    out_dtype = x.dtype

    x2d = x.reshape(-1, dim)
    n_rows = x2d.shape[0]

    if prefer_bf16_matmul and x2d.dtype == jnp.float32:
        # Accuracy tradeoff (documented, opt-in): run both matmuls on the
        # native bf16 MXU path; f32 accumulation preserved inside the kernel.
        x2d = x2d.astype(jnp.bfloat16)
        w1 = w1.astype(jnp.bfloat16)
        w2 = w2.astype(jnp.bfloat16)

    def _isz(a):
        return jnp.dtype(a.dtype).itemsize

    isz_x = _isz(x2d)
    isz_w = max(_isz(w1), _isz(w2))
    isz_out = jnp.dtype(out_dtype).itemsize
    # Sublane multiple per dtype: f32 -> 8, bf16 -> 16, int8/fp8 -> 32.
    sub = max(8, 32 // isz_x)

    budget, lane_align, gen = _vmem_budget_and_align()
    tm_eff, tk_eff, single_k = _select_tiles(
        n_rows, dim, d_ff, isz_x, isz_w, isz_out, sub,
        tm, tk_ff, budget, lane_align, gen)

    b1_2d = b1.reshape(1, d_ff)
    b2_2d = b2.reshape(1, dim)

    n_row_tiles = _cdiv(n_rows, tm_eff)

    # Advisory cost: two [N,dim]x[dim,d_ff] matmuls; weights re-streamed once
    # per row tile in the tiled-k path, streamed once in the resident path.
    w_stream = 1 if single_k else n_row_tiles
    cost = pl.CostEstimate(
        flops=4 * n_rows * dim * d_ff,
        transcendentals=0,
        bytes_accessed=int(
            n_rows * dim * (isz_x + isz_out)
            + w_stream * (w1.size * _isz(w1) + w2.size * _isz(w2)
                          + b1.size * _isz(b1))
            + b2.size * _isz(b2)),
    )

    if single_k:
        grid = (n_row_tiles,)
        kernel = _ffn_kernel_single_k
        in_specs = [
            pl.BlockSpec((tm_eff, dim), lambda i: (i, 0)),   # x rows
            pl.BlockSpec((dim, d_ff), lambda i: (0, 0)),     # w1 (resident)
            pl.BlockSpec((1, d_ff), lambda i: (0, 0)),       # b1 (resident)
            pl.BlockSpec((d_ff, dim), lambda i: (0, 0)),     # w2 (resident)
            pl.BlockSpec((1, dim), lambda i: (0, 0)),        # b2 (resident)
        ]
        out_specs = pl.BlockSpec((tm_eff, dim), lambda i: (i, 0))
        scratch_shapes = ()
        dim_sem = ("parallel",)
    else:
        ragged = (d_ff % tk_eff) != 0
        grid = (n_row_tiles, _cdiv(d_ff, tk_eff))
        kernel = functools.partial(_ffn_kernel_multi_k,
                                   d_ff=d_ff, tk=tk_eff, ragged=ragged)
        in_specs = [
            pl.BlockSpec((tm_eff, dim), lambda i, k: (i, 0)),   # x rows
            pl.BlockSpec((dim, tk_eff), lambda i, k: (0, k)),   # w1 cols
            pl.BlockSpec((1, tk_eff), lambda i, k: (0, k)),     # b1 chunk
            pl.BlockSpec((tk_eff, dim), lambda i, k: (k, 0)),   # w2 rows
            pl.BlockSpec((1, dim), lambda i, k: (0, 0)),        # b2
        ]
        out_specs = pl.BlockSpec((tm_eff, dim), lambda i, k: (i, 0))
        scratch_shapes = (pltpu.VMEM((tm_eff, dim), jnp.float32),)
        dim_sem = ("parallel", "arbitrary")

    out = pl.pallas_call(
        kernel,
        out_shape=jax.ShapeDtypeStruct((n_rows, dim), out_dtype),
        grid_spec=pltpu.PrefetchScalarGridSpec(
            num_scalar_prefetch=0,
            grid=grid,
            in_specs=in_specs,
            out_specs=out_specs,
            scratch_shapes=scratch_shapes,
        ),
        compiler_params=pltpu.CompilerParams(
            dimension_semantics=dim_sem,
            vmem_limit_bytes=int(budget),
        ),
        cost_estimate=cost,
    )(x2d, w1, b1_2d, w2, b2_2d)

    return out.reshape(orig_shape)


def init_feed_forward_params(key, dim, d_ff, dtype=jnp.float32):
    """Deterministic init mimicking nn.Linear's default U(-1/sqrt(fan_in), ...)."""
    k1, k2, k3, k4 = jax.random.split(key, 4)
    bound1 = 1.0 / (dim ** 0.5)
    bound2 = 1.0 / (d_ff ** 0.5)
    # Stored transposed vs. PyTorch ([in, out] instead of [out, in]).
    w1 = jax.random.uniform(k1, (dim, d_ff), jnp.float32, -bound1, bound1).astype(dtype)
    b1 = jax.random.uniform(k2, (d_ff,), jnp.float32, -bound1, bound1).astype(dtype)
    w2 = jax.random.uniform(k3, (d_ff, dim), jnp.float32, -bound2, bound2).astype(dtype)
    b2 = jax.random.uniform(k4, (dim,), jnp.float32, -bound2, bound2).astype(dtype)
    return w1, b1, w2, b2


if __name__ == "__main__":
    key = jax.random.PRNGKey(0)

    # --- Case 1: module defaults, f32, small shapes -> weight-resident
    #             single-k fast path. -------------------------------------
    batch, seq, dim, d_ff = 2, 8, 32, 1024
    kx, kp, krest = jax.random.split(key, 3)
    x = jax.random.normal(kx, (batch, seq, dim), jnp.float32)
    w1, b1, w2, b2 = init_feed_forward_params(kp, dim, d_ff)

    out = jax.block_until_ready(feed_forward(x, w1, b1, w2, b2))
    ref = jnp.maximum(x @ w1 + b1, 0.0) @ w2 + b2
    assert out.shape == (batch, seq, dim)
    assert jnp.allclose(out, ref, atol=1e-4, rtol=1e-4), "case 1 mismatch"

    # --- Case 2: bf16, forced multi-k with a ragged d_ff tail (640 % 256),
    #             ragged last row tile (accumulator + tail masking). -------
    batch2, seq2, dim2, d_ff2 = 5, 8, 128, 640
    kx2, kp2, krest = jax.random.split(krest, 3)
    x2 = jax.random.normal(kx2, (batch2, seq2, dim2), jnp.float32).astype(jnp.bfloat16)
    w1b, b1b, w2b, b2b = init_feed_forward_params(kp2, dim2, d_ff2, jnp.bfloat16)

    out2 = jax.block_until_ready(
        feed_forward(x2, w1b, b1b, w2b, b2b, tm=16, tk_ff=256))
    ref2 = (jnp.maximum(x2.astype(jnp.float32) @ w1b.astype(jnp.float32)
                        + b1b.astype(jnp.float32), 0.0)
            @ w2b.astype(jnp.float32) + b2b.astype(jnp.float32))
    assert out2.shape == (batch2, seq2, dim2)
    assert jnp.allclose(out2.astype(jnp.float32), ref2, atol=5e-2, rtol=5e-2), \
        "case 2 mismatch"

    # --- Case 3: f32 multi-k, exact divisor (no masking), ragged last row
    #             tile. -----------------------------------------------------
    batch3, seq3, dim3, d_ff3 = 6, 8, 128, 512
    kx3, kp3, _ = jax.random.split(krest, 3)
    x3 = jax.random.normal(kx3, (batch3, seq3, dim3), jnp.float32)
    w1c, b1c, w2c, b2c = init_feed_forward_params(kp3, dim3, d_ff3)

    out3 = jax.block_until_ready(
        feed_forward(x3, w1c, b1c, w2c, b2c, tm=32, tk_ff=256))
    ref3 = jnp.maximum(x3 @ w1c + b1c, 0.0) @ w2c + b2c
    assert out3.shape == (batch3, seq3, dim3)
    assert jnp.allclose(out3, ref3, atol=5e-4, rtol=5e-4), "case 3 mismatch"

    # --- Case 4: opt-in bf16 MXU path on f32 params (accuracy tradeoff). ---
    out4 = jax.block_until_ready(
        feed_forward(x, w1, b1, w2, b2, prefer_bf16_matmul=True))
    assert jnp.allclose(out4, ref, atol=5e-2, rtol=5e-2), "case 4 mismatch"

    print("KERNEL_OK")
</pallas_src>

<mosaic_0001>
module attributes {stable_mosaic.version = 11 : i64} {
  func.func @_ffn_kernel_single_k(%arg0: i32, %arg1: memref<16x32xf32, #tpu.memory_space<vmem>>, %arg2: memref<32x1024xf32, #tpu.memory_space<vmem>>, %arg3: memref<1x1024xf32, #tpu.memory_space<vmem>>, %arg4: memref<1024x32xf32, #tpu.memory_space<vmem>>, %arg5: memref<1x32xf32, #tpu.memory_space<vmem>>, %arg6: memref<16x32xf32, #tpu.memory_space<vmem>>) attributes {dimension_semantics = [#tpu.dimension_semantics<parallel>], iteration_bounds = array<i64: 1>, scalar_prefetch = 0 : i64, scratch_operands = 0 : i64, tpu.core_type = #tpu.core_type<tc>, window_params = [{transform_indices = @transform_0, window_bounds = array<i64: 16, 32>}, {pipeline_mode = #tpu.pipeline_mode<synchronous>, transform_indices = @transform_1, window_bounds = array<i64: 32, 1024>}, {pipeline_mode = #tpu.pipeline_mode<synchronous>, transform_indices = @transform_2, window_bounds = array<i64: 1, 1024>}, {pipeline_mode = #tpu.pipeline_mode<synchronous>, transform_indices = @transform_3, window_bounds = array<i64: 1024, 32>}, {pipeline_mode = #tpu.pipeline_mode<synchronous>, transform_indices = @transform_4, window_bounds = array<i64: 1, 32>}, {transform_indices = @transform_5, window_bounds = array<i64: 16, 32>}]} {
    %c0 = arith.constant 0 : index
    %c0_0 = arith.constant 0 : index
    %0 = vector.load %arg1[%c0, %c0_0] : memref<16x32xf32, #tpu.memory_space<vmem>>, vector<16x32xf32>
    %c0_1 = arith.constant 0 : index
    %c0_2 = arith.constant 0 : index
    %1 = vector.load %arg2[%c0_1, %c0_2] : memref<32x1024xf32, #tpu.memory_space<vmem>>, vector<32x1024xf32>
    %cst = arith.constant dense<0.000000e+00> : vector<16x1024xf32>
    %2 = tpu.matmul %0, %1, %cst {dimension_numbers = #tpu.dot_dimension_numbers<[1], [0], [0], [1], [0, 0, 1, 1], [], []>} : vector<16x32xf32>, vector<32x1024xf32>, vector<16x1024xf32> -> vector<16x1024xf32>
    %c0_3 = arith.constant 0 : index
    %c0_4 = arith.constant 0 : index
    %3 = vector.load %arg3[%c0_3, %c0_4] : memref<1x1024xf32, #tpu.memory_space<vmem>>, vector<1x1024xf32>
    %4 = vector.broadcast %3 : vector<1x1024xf32> to vector<16x1024xf32>
    %5 = arith.addf %2, %4 : vector<16x1024xf32>
    %cst_5 = arith.constant 0.000000e+00 : f32
    %6 = vector.broadcast %cst_5 : f32 to vector<16x1024xf32>
    %7 = arith.maximumf %5, %6 : vector<16x1024xf32>
    %c0_6 = arith.constant 0 : index
    %c0_7 = arith.constant 0 : index
    %8 = vector.load %arg4[%c0_6, %c0_7] : memref<1024x32xf32, #tpu.memory_space<vmem>>, vector<1024x32xf32>
    %cst_8 = arith.constant dense<0.000000e+00> : vector<16x32xf32>
    %9 = tpu.matmul %7, %8, %cst_8 {dimension_numbers = #tpu.dot_dimension_numbers<[1], [0], [0], [1], [0, 0, 1, 1], [], []>} : vector<16x1024xf32>, vector<1024x32xf32>, vector<16x32xf32> -> vector<16x32xf32>
    %c0_9 = arith.constant 0 : index
    %c0_10 = arith.constant 0 : index
    %10 = vector.load %arg5[%c0_9, %c0_10] : memref<1x32xf32, #tpu.memory_space<vmem>>, vector<1x32xf32>
    %11 = vector.broadcast %10 : vector<1x32xf32> to vector<16x32xf32>
    %12 = arith.addf %9, %11 : vector<16x32xf32>
    %c0_11 = arith.constant 0 : index
    %c0_12 = arith.constant 0 : index
    %13 = vector.load %arg6[%c0_11, %c0_12] : memref<16x32xf32, #tpu.memory_space<vmem>>, vector<16x32xf32>
    tpu.vector_store %arg6[%c0_11, %c0_12], %12 {strides = array<i32>} : memref<16x32xf32, #tpu.memory_space<vmem>>, vector<16x32xf32>,
    return
  }
  func.func @transform_0(%arg0: i32) -> (i32, i32) {
    %c0_i32 = arith.constant 0 : i32
    %c0_i32_0 = arith.constant 0 : i32
    return %arg0, %c0_i32 : i32, i32
  }
  func.func @transform_1(%arg0: i32) -> (i32, i32) {
    %c0_i32 = arith.constant 0 : i32
    %c0_i32_0 = arith.constant 0 : i32
    %c0_i32_1 = arith.constant 0 : i32
    return %c0_i32, %c0_i32_0 : i32, i32
  }
  func.func @transform_2(%arg0: i32) -> (i32, i32) {
    %c0_i32 = arith.constant 0 : i32
    %c0_i32_0 = arith.constant 0 : i32
    %c0_i32_1 = arith.constant 0 : i32
    return %c0_i32, %c0_i32_0 : i32, i32
  }
  func.func @transform_3(%arg0: i32) -> (i32, i32) {
    %c0_i32 = arith.constant 0 : i32
    %c0_i32_0 = arith.constant 0 : i32
    %c0_i32_1 = arith.constant 0 : i32
    return %c0_i32, %c0_i32_0 : i32, i32
  }
  func.func @transform_4(%arg0: i32) -> (i32, i32) {
    %c0_i32 = arith.constant 0 : i32
    %c0_i32_0 = arith.constant 0 : i32
    %c0_i32_1 = arith.constant 0 : i32
    return %c0_i32, %c0_i32_0 : i32, i32
  }
  func.func @transform_5(%arg0: i32) -> (i32, i32) {
    %c0_i32 = arith.constant 0 : i32
    %c0_i32_0 = arith.constant 0 : i32
    return %arg0, %c0_i32 : i32, i32
  }
}

</mosaic_0001>

<llo_original>
// kernel: feed_forward.1
$region0: #{feed_forward.1}
  #allocation0 [shape = 'u32[]', space=smem, size = 0x4, offset = 0x4, fixed_abs, tag = 'smem constant byte address 0x4 - core index']
  #allocation1 [shape = 'u32[144,128]{1,0:T(1,128)}', space=vmem, size = 0x12000, scoped, tag = 'internal scratch']
  %s0 = inlined_call_operand.vmem [shape: f32[16,32], index: 0, kind: input, shape index: {}]
  %s1 = inlined_call_operand.vmem [shape: f32[32,1024], index: 1, kind: input, shape index: {}]
  %s2 = inlined_call_operand.vmem [shape: f32[1,1024], index: 2, kind: input, shape index: {}]
  %s3 = inlined_call_operand.vmem [shape: f32[1024,32], index: 3, kind: input, shape index: {}]
  %s4 = inlined_call_operand.vmem [shape: f32[1,32], index: 4, kind: input, shape index: {}]
  %s5 = inlined_call_operand.hbm [shape: f32[16,32], index: 5, kind: output, shape index: {}]
  %s6 = sld [smem:[#allocation0]]
  $region30: #{feed_forward.1} parent=0
    _
  %s8 = ssub.s32 1, %s6
  %s9 = scalar_select 0, %s8, %s6
  $region1: #{feed_forward.1} parent=0
    #allocation2 [shape = 'u8[8192]{0}', space=vmem, size = 0x2000, scoped, tag = 'output window, operand 0, single buffered']
    #allocation3 [shape = 's32[1]{0}', space=sflag, size = 0x4, scoped, tag = 'scoped memory for feed_forward.1']
    %10 = vsyncpa [#allocation3], 0
    // Predicated region
    $region2: #{feed_forward.1} parent=1 // pred_check
      _
    $region3: #{feed_forward.1} parent=1 // pred_check_branch
      %12 = sbr.rel (0) target = $region5
    $region4: #{feed_forward.1} parent=1 // pred_region
      _
    $region5: #{feed_forward.1} parent=1 // pred_fallthru
      _
    // Predicated region
    $region6: #{feed_forward.1} parent=1 // pred_check
      _
    $region7: #{feed_forward.1} parent=1 // pred_check_branch
      %14 = sbr.rel (0) target = $region9
    $region8: #{feed_forward.1} parent=1 // pred_region
      _
    $region9: #{feed_forward.1} parent=1 // pred_fallthru
      _
    // Predicated region
    $region10: #{feed_forward.1} parent=1 // pred_check
      _
    $region11: #{feed_forward.1} parent=1 // pred_check_branch
      %16 = sbr.rel (0) target = $region13
    $region12: #{feed_forward.1} parent=1 // pred_region
      _
    $region13: #{feed_forward.1} parent=1 // pred_fallthru
      _
    // Predicated region
    $region14: #{feed_forward.1} parent=1 // pred_check
      _
    $region15: #{feed_forward.1} parent=1 // pred_check_branch
      %18 = sbr.rel (0) target = $region17
    $region16: #{feed_forward.1} parent=1 // pred_region
      _
    $region17: #{feed_forward.1} parent=1 // pred_fallthru
      _
    // Predicated region
    $region18: #{feed_forward.1} parent=1 // pred_check
      _
    $region19: #{feed_forward.1} parent=1 // pred_check_branch
      %20 = sbr.rel (0) target = $region21
    $region20: #{feed_forward.1} parent=1 // pred_region
      _
    $region21: #{feed_forward.1} parent=1 // pred_fallthru
      _
    %v21 = vld [vmem:[%s0] sm:$0xff]
    %v22 = vld [vmem:[%s0 + $0x8] sm:$0xff]
    %v23 = vld [vmem:[%s1] sm:$0xff]
    %v24 = vld [vmem:[%s1 + $0x8] sm:$0xff]
    %v25 = vld [vmem:[%s1 + $0x10] sm:$0xff]
    %v26 = vld [vmem:[%s1 + $0x18] sm:$0xff]
    %v27 = vld [vmem:[%s1 + $0x20] sm:$0xff]
    %v28 = vld [vmem:[%s1 + $0x28] sm:$0xff]
    %v29 = vld [vmem:[%s1 + $0x30] sm:$0xff]
    %v30 = vld [vmem:[%s1 + $0x38] sm:$0xff]
    %v31 = vld [vmem:[%s1 + $0x40] sm:$0xff]
    %v32 = vld [vmem:[%s1 + $0x48] sm:$0xff]
    %v33 = vld [vmem:[%s1 + $0x50] sm:$0xff]
    %v34 = vld [vmem:[%s1 + $0x58] sm:$0xff]
    %v35 = vld [vmem:[%s1 + $0x60] sm:$0xff]
    %v36 = vld [vmem:[%s1 + $0x68] sm:$0xff]
    %v37 = vld [vmem:[%s1 + $0x70] sm:$0xff]
    %v38 = vld [vmem:[%s1 + $0x78] sm:$0xff]
    %v39 = vld [vmem:[%s1 + $0x80] sm:$0xff]
    %v40 = vld [vmem:[%s1 + $0x88] sm:$0xff]
    %v41 = vld [vmem:[%s1 + $0x90] sm:$0xff]
    %v42 = vld [vmem:[%s1 + $0x98] sm:$0xff]
    %v43 = vld [vmem:[%s1 + $0xa0] sm:$0xff]
    %v44 = vld [vmem:[%s1 + $0xa8] sm:$0xff]
    %v45 = vld [vmem:[%s1 + $0xb0] sm:$0xff]
    %v46 = vld [vmem:[%s1 + $0xb8] sm:$0xff]
    %v47 = vld [vmem:[%s1 + $0xc0] sm:$0xff]
    %v48 = vld [vmem:[%s1 + $0xc8] sm:$0xff]
    %v49 = vld [vmem:[%s1 + $0xd0] sm:$0xff]
    %v50 = vld [vmem:[%s1 + $0xd8] sm:$0xff]
    %v51 = vld [vmem:[%s1 + $0xe0] sm:$0xff]
    %v52 = vld [vmem:[%s1 + $0xe8] sm:$0xff]
    %v53 = vld [vmem:[%s1 + $0xf0] sm:$0xff]
    %v54 = vld [vmem:[%s1 + $0xf8] sm:$0xff]
    %v55 = vld [vmem:[%s2] sm:$0xff]
    %v57 = vlaneseq
    %v58 = vshrl.u32 %v57, 7
    %v59 = vsub.s32 0, %v58
    %v60 = vrot.slane %v55, %v59
    %v61 = vlaneseq
    %v62 = vshrl.u32 %v61, 7
    %v63 = vsub.s32 1, %v62
    %v64 = vrot.slane %v55, %v63
    %v65 = vlaneseq
    %v66 = vshrl.u32 %v65, 7
    %v67 = vsub.s32 2, %v66
    %v68 = vrot.slane %v55, %v67
    %v69 = vlaneseq
    %v70 = vshrl.u32 %v69, 7
    %v71 = vsub.s32 3, %v70
    %v72 = vrot.slane %v55, %v71
    %v73 = vlaneseq
    %v74 = vshrl.u32 %v73, 7
    %v75 = vsub.s32 4, %v74
    %v76 = vrot.slane %v55, %v75
    %v77 = vlaneseq
    %v78 = vshrl.u32 %v77, 7
    %v79 = vsub.s32 5, %v78
    %v80 = vrot.slane %v55, %v79
    %v81 = vlaneseq
    %v82 = vshrl.u32 %v81, 7
    %v83 = vsub.s32 6, %v82
    %v84 = vrot.slane %v55, %v83
    %v85 = vlaneseq
    %v86 = vshrl.u32 %v85, 7
    %v87 = vsub.s32 7, %v86
    %v88 = vrot.slane %v55, %v87
    %vm97 = vcmask 261120
    %v99 = vsel %vm97, %v21, 0
    %v102 = vsel %vm97, %v22, 0
    %104 = vmatprep.subr.mxu0 %v24
    %105 = vmatpush1.msra.mxu0 %v23
    %106 = vmatprep.subr.mxu0 %v32
    %107 = vmatpush1.msra.mxu0 %v31
    %108 = vmatprep.subr.mxu0 %v40
    %109 = vmatpush1.msra.mxu0 %v39
    %110 = vmatprep.subr.mxu0 %v48
    %111 = vmatpush1.msra.mxu0 %v47
    %112 = vmatprep.subr.mxu0 0.0
    %113 = vmatpush1.msra.mxu0 0.0
    %114 = vmatprep.subr.mxu0 0.0
    %115 = vmatpush1.msra.mxu0 0.0
    %116 = vmatprep.subr.mxu0 0.0
    %117 = vmatpush1.msra.mxu0 0.0
    %118 = vmatprep.subr.mxu0 0.0
    %119 = vmatpush1.msra.mxu0 0.0
    %120 = vmatprep.subr.mxu0 0.0
    %121 = vmatpush1.msra.mxu0 0.0
    %122 = vmatprep.subr.mxu0 0.0
    %123 = vmatpush1.msra.mxu0 0.0
    %124 = vmatprep.subr.mxu0 0.0
    %125 = vmatpush1.msra.mxu0 0.0
    %126 = vmatprep.subr.mxu0 0.0
    %127 = vmatpush1.msra.mxu0 0.0
    %128 = vmatprep.subr.mxu0 0.0
    %129 = vmatpush1.msra.mxu0 0.0
    %130 = vmatprep.subr.mxu0 0.0
    %131 = vmatpush1.msra.mxu0 0.0
    %132 = vmatprep.subr.mxu0 0.0
    %133 = vmatpush1.msra.mxu0 0.0
    %134 = vmatprep.subr.mxu0 0.0
    %135 = vmatpush1.msra.mxu0 0.0
    %136 = vmatprep.subr.mxu0 0.0
    %137 = vmatpush1.msra.mxu0 0.0
    %138 = vmatprep.subr.mxu0 0.0
    %139 = vmatpush1.msra.mxu0 0.0
    %140 = vmatprep.subr.mxu0 0.0
    %141 = vmatpush1.msra.mxu0 0.0
    %142 = vmatprep.subr.mxu0 0.0
    %143 = vmatpush1.msra.mxu0 0.0
    %144 = vmatprep.subr.mxu0 0.0
    %145 = vmatpush1.msra.mxu0 0.0
    %146 = vmatprep.subr.mxu0 0.0
    %147 = vmatpush1.msra.mxu0 0.0
    %148 = vmatprep.subr.mxu0 0.0
    %149 = vmatpush1.msra.mxu0 0.0
    %150 = vmatprep.subr.mxu0 0.0
    %151 = vmatpush1.msra.mxu0 0.0
    %152 = vmatprep.subr.mxu0 0.0
    %153 = vmatpush1.msra.mxu0 0.0
    %154 = vmatprep.subr.mxu0 0.0
    %155 = vmatpush1.msra.mxu0 0.0
    %156 = vmatprep.subr.mxu0 0.0
    %157 = vmatpush1.msra.mxu0 0.0
    %158 = vmatprep.subr.mxu0 0.0
    %159 = vmatpush1.msra.mxu0 0.0
    %160 = vmatprep.subr.mxu0 0.0
    %161 = vmatpush1.msra.mxu0 0.0
    %162 = vmatprep.subr.mxu0 0.0
    %163 = vmatpush1.msra.mxu0 0.0
    %164 = vmatprep.subr.mxu0 0.0
    %165 = vmatpush1.msra.mxu0 0.0
    %166 = vmatprep.subr.mxu0 0.0
    %167 = vmatpush1.msra.mxu0 0.0
    %168 = vmatprep.mubr.f32.mxu0 0.0
    %169 = vmatmul.mubr.f32.gmra.mrb[0].mxu0 %v99
    %v170 = vpop.f32.mrb[0].mxu0
    %v171 = vadd.f32 %v60, %v170
    %v172 = vpop.f32.mrb[0].mxu0
    %v173 = vadd.f32 %v64, %v172
    %174 = vmatprep.mubr.f32.mxu0 0.0
    %175 = vmatmul.mubr.f32.gmra.mrb[0].mxu0 %v102
    %v176 = vpop.f32.mrb[0].mxu0
    %v177 = vadd.f32 %v60, %v176
    %v178 = vpop.f32.mrb[0].mxu0
    %v179 = vadd.f32 %v64, %v178
    %180 = vdwg.mxu0
    %181 = vmatprep.subr.mxu0 %v26
    %182 = vmatpush1.msra.mxu0 %v25
    %183 = vmatprep.subr.mxu0 %v34
    %184 = vmatpush1.msra.mxu0 %v33
    %185 = vmatprep.subr.mxu0 %v42
    %186 = vmatpush1.msra.mxu0 %v41
    %187 = vmatprep.subr.mxu0 %v50
    %188 = vmatpush1.msra.mxu0 %v49
    %189 = vmatprep.subr.mxu0 0.0
    %190 = vmatpush1.msra.mxu0 0.0
    %191 = vmatprep.subr.mxu0 0.0
    %192 = vmatpush1.msra.mxu0 0.0
    %193 = vmatprep.subr.mxu0 0.0
    %194 = vmatpush1.msra.mxu0 0.0
    %195 = vmatprep.subr.mxu0 0.0
    %196 = vmatpush1.msra.mxu0 0.0
    %197 = vmatprep.subr.mxu0 0.0
    %198 = vmatpush1.msra.mxu0 0.0
    %199 = vmatprep.subr.mxu0 0.0
    %200 = vmatpush1.msra.mxu0 0.0
    %201 = vmatprep.subr.mxu0 0.0
    %202 = vmatpush1.msra.mxu0 0.0
    %203 = vmatprep.subr.mxu0 0.0
    %204 = vmatpush1.msra.mxu0 0.0
    %205 = vmatprep.subr.mxu0 0.0
    %206 = vmatpush1.msra.mxu0 0.0
    %207 = vmatprep.subr.mxu0 0.0
    %208 = vmatpush1.msra.mxu0 0.0
    %209 = vmatprep.subr.mxu0 0.0
    %210 = vmatpush1.msra.mxu0 0.0
    %211 = vmatprep.subr.mxu0 0.0
    %212 = vmatpush1.msra.mxu0 0.0
    %213 = vmatprep.subr.mxu0 0.0
    %214 = vmatpush1.msra.mxu0 0.0
    %215 = vmatprep.subr.mxu0 0.0
    %216 = vmatpush1.msra.mxu0 0.0
    %217 = vmatprep.subr.mxu0 0.0
    %218 = vmatpush1.msra.mxu0 0.0
    %219 = vmatprep.subr.mxu0 0.0
    %220 = vmatpush1.msra.mxu0 0.0
    %221 = vmatprep.subr.mxu0 0.0
    %222 = vmatpush1.msra.mxu0 0.0
    %223 = vmatprep.subr.mxu0 0.0
    %224 = vmatpush1.msra.mxu0 0.0
    %225 = vmatprep.subr.mxu0 0.0
    %226 = vmatpush1.msra.mxu0 0.0
    %227 = vmatprep.subr.mxu0 0.0
    %228 = vmatpush1.msra.mxu0 0.0
    %229 = vmatprep.subr.mxu0 0.0
    %230 = vmatpush1.msra.mxu0 0.0
    %231 = vmatprep.subr.mxu0 0.0
    %232 = vmatpush1.msra.mxu0 0.0
    %233 = vmatprep.subr.mxu0 0.0
    %234 = vmatpush1.msra.mxu0 0.0
    %235 = vmatprep.subr.mxu0 0.0
    %236 = vmatpush1.msra.mxu0 0.0
    %237 = vmatprep.subr.mxu0 0.0
    %238 = vmatpush1.msra.mxu0 0.0
    %239 = vmatprep.subr.mxu0 0.0
    %240 = vmatpush1.msra.mxu0 0.0
    %241 = vmatprep.subr.mxu0 0.0
    %242 = vmatpush1.msra.mxu0 0.0
    %243 = vmatprep.subr.mxu0 0.0
    %244 = vmatpush1.msra.mxu0 0.0
    %245 = vmatprep.mubr.f32.mxu0 0.0
    %246 = vmatmul.mubr.f32.gmra.mrb[0].mxu0 %v99
    %v247 = vpop.f32.mrb[0].mxu0
    %v248 = vadd.f32 %v68, %v247
    %v249 = vpop.f32.mrb[0].mxu0
    %v250 = vadd.f32 %v72, %v249
    %251 = vmatprep.mubr.f32.mxu0 0.0
    %252 = vmatmul.mubr.f32.gmra.mrb[0].mxu0 %v102
    %v253 = vpop.f32.mrb[0].mxu0
    %v254 = vadd.f32 %v68, %v253
    %v255 = vpop.f32.mrb[0].mxu0
    %v256 = vadd.f32 %v72, %v255
    %257 = vdwg.mxu0
    %258 = vmatprep.subr.mxu0 %v28
    %259 = vmatpush1.msra.mxu0 %v27
    %260 = vmatprep.subr.mxu0 %v36
    %261 = vmatpush1.msra.mxu0 %v35
    %262 = vmatprep.subr.mxu0 %v44
    %263 = vmatpush1.msra.mxu0 %v43
    %264 = vmatprep.subr.mxu0 %v52
    %265 = vmatpush1.msra.mxu0 %v51
    %266 = vmatprep.subr.mxu0 0.0
    %267 = vmatpush1.msra.mxu0 0.0
    %268 = vmatprep.subr.mxu0 0.0
    %269 = vmatpush1.msra.mxu0 0.0
    %270 = vmatprep.subr.mxu0 0.0
    %271 = vmatpush1.msra.mxu0 0.0
    %272 = vmatprep.subr.mxu0 0.0
    %273 = vmatpush1.msra.mxu0 0.0
    %274 = vmatprep.subr.mxu0 0.0
    %275 = vmatpush1.msra.mxu0 0.0
    %276 = vmatprep.subr.mxu0 0.0
    %277 = vmatpush1.msra.mxu0 0.0
    %278 = vmatprep.subr.mxu0 0.0
    %279 = vmatpush1.msra.mxu0 0.0
    %280 = vmatprep.subr.mxu0 0.0
    %281 = vmatpush1.msra.mxu0 0.0
    %282 = vmatprep.subr.mxu0 0.0
    %283 = vmatpush1.msra.mxu0 0.0
    %284 = vmatprep.subr.mxu0 0.0
    %285 = vmatpush1.msra.mxu0 0.0
    %286 = vmatprep.subr.mxu0 0.0
    %287 = vmatpush1.msra.mxu0 0.0
    %288 = vmatprep.subr.mxu0 0.0
    %289 = vmatpush1.msra.mxu0 0.0
    %290 = vmatprep.subr.mxu0 0.0
    %291 = vmatpush1.msra.mxu0 0.0
    %292 = vmatprep.subr.mxu0 0.0
    %293 = vmatpush1.msra.mxu0 0.0
    %294 = vmatprep.subr.mxu0 0.0
    %295 = vmatpush1.msra.mxu0 0.0
    %296 = vmatprep.subr.mxu0 0.0
    %297 = vmatpush1.msra.mxu0 0.0
    %298 = vmatprep.subr.mxu0 0.0
    %299 = vmatpush1.msra.mxu0 0.0
    %300 = vmatprep.subr.mxu0 0.0
    %301 = vmatpush1.msra.mxu0 0.0
    %302 = vmatprep.subr.mxu0 0.0
    %303 = vmatpush1.msra.mxu0 0.0
    %304 = vmatprep.subr.mxu0 0.0
    %305 = vmatpush1.msra.mxu0 0.0
    %306 = vmatprep.subr.mxu0 0.0
    %307 = vmatpush1.msra.mxu0 0.0
    %308 = vmatprep.subr.mxu0 0.0
    %309 = vmatpush1.msra.mxu0 0.0
    %310 = vmatprep.subr.mxu0 0.0
    %311 = vmatpush1.msra.mxu0 0.0
    %312 = vmatprep.subr.mxu0 0.0
    %313 = vmatpush1.msra.mxu0 0.0
    %314 = vmatprep.subr.mxu0 0.0
    %315 = vmatpush1.msra.mxu0 0.0
    %316 = vmatprep.subr.mxu0 0.0
    %317 = vmatpush1.msra.mxu0 0.0
    %318 = vmatprep.subr.mxu0 0.0
    %319 = vmatpush1.msra.mxu0 0.0
    %320 = vmatprep.subr.mxu0 0.0
    %321 = vmatpush1.msra.mxu0 0.0
    %322 = vmatprep.mubr.f32.mxu0 0.0
    %323 = vmatmul.mubr.f32.gmra.mrb[0].mxu0 %v99
    %v324 = vpop.f32.mrb[0].mxu0
    %v325 = vadd.f32 %v76, %v324
    %v326 = vpop.f32.mrb[0].mxu0
    %v327 = vadd.f32 %v80, %v326
    %328 = vmatprep.mubr.f32.mxu0 0.0
    %329 = vmatmul.mubr.f32.gmra.mrb[0].mxu0 %v102
    %v330 = vpop.f32.mrb[0].mxu0
    %v331 = vadd.f32 %v76, %v330
    %v332 = vpop.f32.mrb[0].mxu0
    %v333 = vadd.f32 %v80, %v332
    %334 = vdwg.mxu0
    %335 = vmatprep.subr.mxu0 %v30
    %336 = vmatpush1.msra.mxu0 %v29
    %337 = vmatprep.subr.mxu0 %v38
    %338 = vmatpush1.msra.mxu0 %v37
    %339 = vmatprep.subr.mxu0 %v46
    %340 = vmatpush1.msra.mxu0 %v45
    %341 = vmatprep.subr.mxu0 %v54
    %342 = vmatpush1.msra.mxu0 %v53
    %343 = vmatprep.subr.mxu0 0.0
    %344 = vmatpush1.msra.mxu0 0.0
    %345 = vmatprep.subr.mxu0 0.0
    %346 = vmatpush1.msra.mxu0 0.0
    %347 = vmatprep.subr.mxu0 0.0
    %348 = vmatpush1.msra.mxu0 0.0
    %349 = vmatprep.subr.mxu0 0.0
    %350 = vmatpush1.msra.mxu0 0.0
    %351 = vmatprep.subr.mxu0 0.0
    %352 = vmatpush1.msra.mxu0 0.0
    %353 = vmatprep.subr.mxu0 0.0
    %354 = vmatpush1.msra.mxu0 0.0
    %355 = vmatprep.subr.mxu0 0.0
    %356 = vmatpush1.msra.mxu0 0.0
    %357 = vmatprep.subr.mxu0 0.0
    %358 = vmatpush1.msra.mxu0 0.0
    %359 = vmatprep.subr.mxu0 0.0
    %360 = vmatpush1.msra.mxu0 0.0
    %361 = vmatprep.subr.mxu0 0.0
    %362 = vmatpush1.msra.mxu0 0.0
    %363 = vmatprep.subr.mxu0 0.0
    %364 = vmatpush1.msra.mxu0 0.0
    %365 = vmatprep.subr.mxu0 0.0
    %366 = vmatpush1.msra.mxu0 0.0
    %367 = vmatprep.subr.mxu0 0.0
    %368 = vmatpush1.msra.mxu0 0.0
    %369 = vmatprep.subr.mxu0 0.0
    %370 = vmatpush1.msra.mxu0 0.0
    %371 = vmatprep.subr.mxu0 0.0
    %372 = vmatpush1.msra.mxu0 0.0
    %373 = vmatprep.subr.mxu0 0.0
    %374 = vmatpush1.msra.mxu0 0.0
    %375 = vmatprep.subr.mxu0 0.0
    %376 = vmatpush1.msra.mxu0 0.0
    %377 = vmatprep.subr.mxu0 0.0
    %378 = vmatpush1.msra.mxu0 0.0
    %379 = vmatprep.subr.mxu0 0.0
    %380 = vmatpush1.msra.mxu0 0.0
    %381 = vmatprep.subr.mxu0 0.0
    %382 = vmatpush1.msra.mxu0 0.0
    %383 = vmatprep.subr.mxu0 0.0
    %384 = vmatpush1.msra.mxu0 0.0
    %385 = vmatprep.subr.mxu0 0.0
    %386 = vmatpush1.msra.mxu0 0.0
    %387 = vmatprep.subr.mxu0 0.0
    %388 = vmatpush1.msra.mxu0 0.0
    %389 = vmatprep.subr.mxu0 0.0
    %390 = vmatpush1.msra.mxu0 0.0
    %391 = vmatprep.subr.mxu0 0.0
    %392 = vmatpush1.msra.mxu0 0.0
    %393 = vmatprep.subr.mxu0 0.0
    %394 = vmatpush1.msra.mxu0 0.0
    %395 = vmatprep.subr.mxu0 0.0
    %396 = vmatpush1.msra.mxu0 0.0
    %397 = vmatprep.subr.mxu0 0.0
    %398 = vmatpush1.msra.mxu0 0.0
    %399 = vmatprep.mubr.f32.mxu0 0.0
    %400 = vmatmul.mubr.f32.gmra.mrb[0].mxu0 %v99
    %v401 = vpop.f32.mrb[0].mxu0
    %v402 = vadd.f32 %v84, %v401
    %v403 = vpop.f32.mrb[0].mxu0
    %v404 = vadd.f32 %v88, %v403
    %405 = vmatprep.mubr.f32.mxu0 0.0
    %406 = vmatmul.mubr.f32.gmra.mrb[0].mxu0 %v102
    %v407 = vpop.f32.mrb[0].mxu0
    %v408 = vadd.f32 %v84, %v407
    %v409 = vpop.f32.mrb[0].mxu0
    %v410 = vadd.f32 %v88, %v409
    %411 = vdwg.mxu0
    %v412 = vmax.f32 %v171, 0.0
    %v413 = vmax.f32 %v173, 0.0
    %v414 = vmax.f32 %v248, 0.0
    %v415 = vmax.f32 %v250, 0.0
    %v416 = vmax.f32 %v325, 0.0
    %v417 = vmax.f32 %v327, 0.0
    %v418 = vmax.f32 %v402, 0.0
    %v419 = vmax.f32 %v404, 0.0
    %v420 = vmax.f32 %v177, 0.0
    %v421 = vmax.f32 %v179, 0.0
    %v422 = vmax.f32 %v254, 0.0
    %v423 = vmax.f32 %v256, 0.0
    %v424 = vmax.f32 %v331, 0.0
    %v425 = vmax.f32 %v333, 0.0
    %v426 = vmax.f32 %v408, 0.0
    %v427 = vmax.f32 %v410, 0.0
    %v428 = vld [vmem:[%s3] sm:$0xff]
    %v429 = vld [vmem:[%s3 + $0x8] sm:$0xff]
    %v430 = vld [vmem:[%s3 + $0x10] sm:$0xff]
    %v431 = vld [vmem:[%s3 + $0x18] sm:$0xff]
    %v432 = vld [vmem:[%s3 + $0x20] sm:$0xff]
    %v433 = vld [vmem:[%s3 + $0x28] sm:$0xff]
    %v434 = vld [vmem:[%s3 + $0x30] sm:$0xff]
    %v435 = vld [vmem:[%s3 + $0x38] sm:$0xff]
    %v436 = vld [vmem:[%s3 + $0x40] sm:$0xff]
    %v437 = vld [vmem:[%s3 + $0x48] sm:$0xff]
    %v438 = vld [vmem:[%s3 + $0x50] sm:$0xff]
    %v439 = vld [vmem:[%s3 + $0x58] sm:$0xff]
    %v440 = vld [vmem:[%s3 + $0x60] sm:$0xff]
    %v441 = vld [vmem:[%s3 + $0x68] sm:$0xff]
    %v442 = vld [vmem:[%s3 + $0x70] sm:$0xff]
    %v443 = vld [vmem:[%s3 + $0x78] sm:$0xff]
    %v444 = vld [vmem:[%s3 + $0x80] sm:$0xff]
    %v445 = vld [vmem:[%s3 + $0x88] sm:$0xff]
    %v446 = vld [vmem:[%s3 + $0x90] sm:$0xff]
    %v447 = vld [vmem:[%s3 + $0x98] sm:$0xff]
    %v448 = vld [vmem:[%s3 + $0xa0] sm:$0xff]
    %v449 = vld [vmem:[%s3 + $0xa8] sm:$0xff]
    %v450 = vld [vmem:[%s3 + $0xb0] sm:$0xff]
    %v451 = vld [vmem:[%s3 + $0xb8] sm:$0xff]
    %v452 = vld [vmem:[%s3 + $0xc0] sm:$0xff]
    %v453 = vld [vmem:[%s3 + $0xc8] sm:$0xff]
    %v454 = vld [vmem:[%s3 + $0xd0] sm:$0xff]
    %v455 = vld [vmem:[%s3 + $0xd8] sm:$0xff]
    %v456 = vld [vmem:[%s3 + $0xe0] sm:$0xff]
    %v457 = vld [vmem:[%s3 + $0xe8] sm:$0xff]
    %v458 = vld [vmem:[%s3 + $0xf0] sm:$0xff]
    %v459 = vld [vmem:[%s3 + $0xf8] sm:$0xff]
    %v460 = vld [vmem:[%s3 + $0x100] sm:$0xff]
    %v461 = vld [vmem:[%s3 + $0x108] sm:$0xff]
    %v462 = vld [vmem:[%s3 + $0x110] sm:$0xff]
    %v463 = vld [vmem:[%s3 + $0x118] sm:$0xff]
    %v464 = vld [vmem:[%s3 + $0x120] sm:$0xff]
    %v465 = vld [vmem:[%s3 + $0x128] sm:$0xff]
    %v466 = vld [vmem:[%s3 + $0x130] sm:$0xff]
    %v467 = vld [vmem:[%s3 + $0x138] sm:$0xff]
    %v468 = vld [vmem:[%s3 + $0x140] sm:$0xff]
    %v469 = vld [vmem:[%s3 + $0x148] sm:$0xff]
    %v470 = vld [vmem:[%s3 + $0x150] sm:$0xff]
    %v471 = vld [vmem:[%s3 + $0x158] sm:$0xff]
    %v472 = vld [vmem:[%s3 + $0x160] sm:$0xff]
    %v473 = vld [vmem:[%s3 + $0x168] sm:$0xff]
    %v474 = vld [vmem:[%s3 + $0x170] sm:$0xff]
    %v475 = vld [vmem:[%s3 + $0x178] sm:$0xff]
    %v476 = vld [vmem:[%s3 + $0x180] sm:$0xff]
    %v477 = vld [vmem:[%s3 + $0x188] sm:$0xff]
    %v478 = vld [vmem:[%s3 + $0x190] sm:$0xff]
    %v479 = vld [vmem:[%s3 + $0x198] sm:$0xff]
    %v480 = vld [vmem:[%s3 + $0x1a0] sm:$0xff]
    %v481 = vld [vmem:[%s3 + $0x1a8] sm:$0xff]
    %v482 = vld [vmem:[%s3 + $0x1b0] sm:$0xff]
    %v483 = vld [vmem:[%s3 + $0x1b8] sm:$0xff]
    %v484 = vld [vmem:[%s3 + $0x1c0] sm:$0xff]
    %v485 = vld [vmem:[%s3 + $0x1c8] sm:$0xff]
    %v486 = vld [vmem:[%s3 + $0x1d0] sm:$0xff]
    %v487 = vld [vmem:[%s3 + $0x1d8] sm:$0xff]
    %v488 = vld [vmem:[%s3 + $0x1e0] sm:$0xff]
    %v489 = vld [vmem:[%s3 + $0x1e8] sm:$0xff]
    %v490 = vld [vmem:[%s3 + $0x1f0] sm:$0xff]
    %v491 = vld [vmem:[%s3 + $0x1f8] sm:$0xff]
    %v492 = vld [vmem:[%s3 + $0x200] sm:$0xff]
    %v493 = vld [vmem:[%s3 + $0x208] sm:$0xff]
    %v494 = vld [vmem:[%s3 + $0x210] sm:$0xff]
    %v495 = vld [vmem:[%s3 + $0x218] sm:$0xff]
    %v496 = vld [vmem:[%s3 + $0x220] sm:$0xff]
    %v497 = vld [vmem:[%s3 + $0x228] sm:$0xff]
    %v498 = vld [vmem:[%s3 + $0x230] sm:$0xff]
    %v499 = vld [vmem:[%s3 + $0x238] sm:$0xff]
    %v500 = vld [vmem:[%s3 + $0x240] sm:$0xff]
    %v501 = vld [vmem:[%s3 + $0x248] sm:$0xff]
    %v502 = vld [vmem:[%s3 + $0x250] sm:$0xff]
    %v503 = vld [vmem:[%s3 + $0x258] sm:$0xff]
    %v504 = vld [vmem:[%s3 + $0x260] sm:$0xff]
    %v505 = vld [vmem:[%s3 + $0x268] sm:$0xff]
    %v506 = vld [vmem:[%s3 + $0x270] sm:$0xff]
    %v507 = vld [vmem:[%s3 + $0x278] sm:$0xff]
    %v508 = vld [vmem:[%s3 + $0x280] sm:$0xff]
    %v509 = vld [vmem:[%s3 + $0x288] sm:$0xff]
    %v510 = vld [vmem:[%s3 + $0x290] sm:$0xff]
    %v511 = vld [vmem:[%s3 + $0x298] sm:$0xff]
    %v512 = vld [vmem:[%s3 + $0x2a0] sm:$0xff]
    %v513 = vld [vmem:[%s3 + $0x2a8] sm:$0xff]
    %v514 = vld [vmem:[%s3 + $0x2b0] sm:$0xff]
    %v515 = vld [vmem:[%s3 + $0x2b8] sm:$0xff]
    %v516 = vld [vmem:[%s3 + $0x2c0] sm:$0xff]
    %v517 = vld [vmem:[%s3 + $0x2c8] sm:$0xff]
    %v518 = vld [vmem:[%s3 + $0x2d0] sm:$0xff]
    %v519 = vld [vmem:[%s3 + $0x2d8] sm:$0xff]
    %v520 = vld [vmem:[%s3 + $0x2e0] sm:$0xff]
    %v521 = vld [vmem:[%s3 + $0x2e8] sm:$0xff]
    %v522 = vld [vmem:[%s3 + $0x2f0] sm:$0xff]
    %v523 = vld [vmem:[%s3 + $0x2f8] sm:$0xff]
    %v524 = vld [vmem:[%s3 + $0x300] sm:$0xff]
    %v525 = vld [vmem:[%s3 + $0x308] sm:$0xff]
    %v526 = vld [vmem:[%s3 + $0x310] sm:$0xff]
    %v527 = vld [vmem:[%s3 + $0x318] sm:$0xff]
    %v528 = vld [vmem:[%s3 + $0x320] sm:$0xff]
    %v529 = vld [vmem:[%s3 + $0x328] sm:$0xff]
    %v530 = vld [vmem:[%s3 + $0x330] sm:$0xff]
    %v531 = vld [vmem:[%s3 + $0x338] sm:$0xff]
    %v532 = vld [vmem:[%s3 + $0x340] sm:$0xff]
    %v533 = vld [vmem:[%s3 + $0x348] sm:$0xff]
    %v534 = vld [vmem:[%s3 + $0x350] sm:$0xff]
    %v535 = vld [vmem:[%s3 + $0x358] sm:$0xff]
    %v536 = vld [vmem:[%s3 + $0x360] sm:$0xff]
    %v537 = vld [vmem:[%s3 + $0x368] sm:$0xff]
    %v538 = vld [vmem:[%s3 + $0x370] sm:$0xff]
    %v539 = vld [vmem:[%s3 + $0x378] sm:$0xff]
    %v540 = vld [vmem:[%s3 + $0x380] sm:$0xff]
    %v541 = vld [vmem:[%s3 + $0x388] sm:$0xff]
    %v542 = vld [vmem:[%s3 + $0x390] sm:$0xff]
    %v543 = vld [vmem:[%s3 + $0x398] sm:$0xff]
    %v544 = vld [vmem:[%s3 + $0x3a0] sm:$0xff]
    %v545 = vld [vmem:[%s3 + $0x3a8] sm:$0xff]
    %v546 = vld [vmem:[%s3 + $0x3b0] sm:$0xff]
    %v547 = vld [vmem:[%s3 + $0x3b8] sm:$0xff]
    %v548 = vld [vmem:[%s3 + $0x3c0] sm:$0xff]
    %v549 = vld [vmem:[%s3 + $0x3c8] sm:$0xff]
    %v550 = vld [vmem:[%s3 + $0x3d0] sm:$0xff]
    %v551 = vld [vmem:[%s3 + $0x3d8] sm:$0xff]
    %v552 = vld [vmem:[%s3 + $0x3e0] sm:$0xff]
    %v553 = vld [vmem:[%s3 + $0x3e8] sm:$0xff]
    %v554 = vld [vmem:[%s3 + $0x3f0] sm:$0xff]
    %v555 = vld [vmem:[%s3 + $0x3f8] sm:$0xff]
    %v556 = vld [vmem:[%s4] sm:$0x1]
    %v558 = vlaneseq
    %v559 = vshrl.u32 %v558, 7
    %v560 = vsub.s32 0, %v559
    %v561 = vrot.slane %v556, %v560
    %563 = vmatprep.subr.mxu0 0.0
    %564 = vmatpush1.msra.mxu0 %v428
    %565 = vmatprep.subr.mxu0 0.0
    %566 = vmatpush1.msra.mxu0 %v429
    %567 = vmatprep.subr.mxu0 0.0
    %568 = vmatpush1.msra.mxu0 %v430
    %569 = vmatprep.subr.mxu0 0.0
    %570 = vmatpush1.msra.mxu0 %v431
    %571 = vmatprep.subr.mxu0 0.0
    %572 = vmatpush1.msra.mxu0 %v432
    %573 = vmatprep.subr.mxu0 0.0
    %574 = vmatpush1.msra.mxu0 %v433
    %575 = vmatprep.subr.mxu0 0.0
    %576 = vmatpush1.msra.mxu0 %v434
    %577 = vmatprep.subr.mxu0 0.0
    %578 = vmatpush1.msra.mxu0 %v435
    %579 = vmatprep.subr.mxu0 0.0
    %580 = vmatpush1.msra.mxu0 %v436
    %581 = vmatprep.subr.mxu0 0.0
    %582 = vmatpush1.msra.mxu0 %v437
    %583 = vmatprep.subr.mxu0 0.0
    %584 = vmatpush1.msra.mxu0 %v438
    %585 = vmatprep.subr.mxu0 0.0
    %586 = vmatpush1.msra.mxu0 %v439
    %587 = vmatprep.subr.mxu0 0.0
    %588 = vmatpush1.msra.mxu0 %v440
    %589 = vmatprep.subr.mxu0 0.0
    %590 = vmatpush1.msra.mxu0 %v441
    %591 = vmatprep.subr.mxu0 0.0
    %592 = vmatpush1.msra.mxu0 %v442
    %593 = vmatprep.subr.mxu0 0.0
    %594 = vmatpush1.msra.mxu0 %v443
    %595 = vmatprep.subr.mxu0 0.0
    %596 = vmatpush1.msra.mxu0 %v444
    %597 = vmatprep.subr.mxu0 0.0
    %598 = vmatpush1.msra.mxu0 %v445
    %599 = vmatprep.subr.mxu0 0.0
    %600 = vmatpush1.msra.mxu0 %v446
    %601 = vmatprep.subr.mxu0 0.0
    %602 = vmatpush1.msra.mxu0 %v447
    %603 = vmatprep.subr.mxu0 0.0
    %604 = vmatpush1.msra.mxu0 %v448
    %605 = vmatprep.subr.mxu0 0.0
    %606 = vmatpush1.msra.mxu0 %v449
    %607 = vmatprep.subr.mxu0 0.0
    %608 = vmatpush1.msra.mxu0 %v450
    %609 = vmatprep.subr.mxu0 0.0
    %610 = vmatpush1.msra.mxu0 %v451
    %611 = vmatprep.subr.mxu0 0.0
    %612 = vmatpush1.msra.mxu0 %v452
    %613 = vmatprep.subr.mxu0 0.0
    %614 = vmatpush1.msra.mxu0 %v453
    %615 = vmatprep.subr.mxu0 0.0
    %616 = vmatpush1.msra.mxu0 %v454
    %617 = vmatprep.subr.mxu0 0.0
    %618 = vmatpush1.msra.mxu0 %v455
    %619 = vmatprep.subr.mxu0 0.0
    %620 = vmatpush1.msra.mxu0 %v456
    %621 = vmatprep.subr.mxu0 0.0
    %622 = vmatpush1.msra.mxu0 %v457
    %623 = vmatprep.subr.mxu0 0.0
    %624 = vmatpush1.msra.mxu0 %v458
    %625 = vmatprep.subr.mxu0 0.0
    %626 = vmatpush1.msra.mxu0 %v459
    %627 = vmatprep.mubr.f32.mxu0 %v413
    %628 = vmatmul.mubr.f32.gmra.mrb[0].mxu0 %v412
    %v629 = vpop.f32.mrb[0].mxu0
    %v630 = vadd.f32 %v561, %v629
    %v631 = vpop.f32.mrb[0].mxu0
    %632 = vmatprep.mubr.f32.mxu0 %v421
    %633 = vmatmul.mubr.f32.gmra.mrb[0].mxu0 %v420
    %v634 = vpop.f32.mrb[0].mxu0
    %v635 = vadd.f32 %v561, %v634
    %v636 = vpop.f32.mrb[0].mxu0
    %637 = vdwg.mxu0
    %638 = vmatprep.subr.mxu0 0.0
    %639 = vmatpush1.msra.mxu0 %v460
    %640 = vmatprep.subr.mxu0 0.0
    %641 = vmatpush1.msra.mxu0 %v461
    %642 = vmatprep.subr.mxu0 0.0
    %643 = vmatpush1.msra.mxu0 %v462
    %644 = vmatprep.subr.mxu0 0.0
    %645 = vmatpush1.msra.mxu0 %v463
    %646 = vmatprep.subr.mxu0 0.0
    %647 = vmatpush1.msra.mxu0 %v464
    %648 = vmatprep.subr.mxu0 0.0
    %649 = vmatpush1.msra.mxu0 %v465
    %650 = vmatprep.subr.mxu0 0.0
    %651 = vmatpush1.msra.mxu0 %v466
    %652 = vmatprep.subr.mxu0 0.0
    %653 = vmatpush1.msra.mxu0 %v467
    %654 = vmatprep.subr.mxu0 0.0
    %655 = vmatpush1.msra.mxu0 %v468
    %656 = vmatprep.subr.mxu0 0.0
    %657 = vmatpush1.msra.mxu0 %v469
    %658 = vmatprep.subr.mxu0 0.0
    %659 = vmatpush1.msra.mxu0 %v470
    %660 = vmatprep.subr.mxu0 0.0
    %661 = vmatpush1.msra.mxu0 %v471
    %662 = vmatprep.subr.mxu0 0.0
    %663 = vmatpush1.msra.mxu0 %v472
    %664 = vmatprep.subr.mxu0 0.0
    %665 = vmatpush1.msra.mxu0 %v473
    %666 = vmatprep.subr.mxu0 0.0
    %667 = vmatpush1.msra.mxu0 %v474
    %668 = vmatprep.subr.mxu0 0.0
    %669 = vmatpush1.msra.mxu0 %v475
    %670 = vmatprep.subr.mxu0 0.0
    %671 = vmatpush1.msra.mxu0 %v476
    %672 = vmatprep.subr.mxu0 0.0
    %673 = vmatpush1.msra.mxu0 %v477
    %674 = vmatprep.subr.mxu0 0.0
    %675 = vmatpush1.msra.mxu0 %v478
    %676 = vmatprep.subr.mxu0 0.0
    %677 = vmatpush1.msra.mxu0 %v479
    %678 = vmatprep.subr.mxu0 0.0
    %679 = vmatpush1.msra.mxu0 %v480
    %680 = vmatprep.subr.mxu0 0.0
    %681 = vmatpush1.msra.mxu0 %v481
    %682 = vmatprep.subr.mxu0 0.0
    %683 = vmatpush1.msra.mxu0 %v482
    %684 = vmatprep.subr.mxu0 0.0
    %685 = vmatpush1.msra.mxu0 %v483
    %686 = vmatprep.subr.mxu0 0.0
    %687 = vmatpush1.msra.mxu0 %v484
    %688 = vmatprep.subr.mxu0 0.0
    %689 = vmatpush1.msra.mxu0 %v485
    %690 = vmatprep.subr.mxu0 0.0
    %691 = vmatpush1.msra.mxu0 %v486
    %692 = vmatprep.subr.mxu0 0.0
    %693 = vmatpush1.msra.mxu0 %v487
    %694 = vmatprep.subr.mxu0 0.0
    %695 = vmatpush1.msra.mxu0 %v488
    %696 = vmatprep.subr.mxu0 0.0
    %697 = vmatpush1.msra.mxu0 %v489
    %698 = vmatprep.subr.mxu0 0.0
    %699 = vmatpush1.msra.mxu0 %v490
    %700 = vmatprep.subr.mxu0 0.0
    %701 = vmatpush1.msra.mxu0 %v491
    %702 = vmatprep.mubr.f32.mxu0 %v415
    %703 = vmatmul.mubr.f32.gmra.mrb[0].mxu0 %v414
    %v704 = vpop.f32.mrb[0].mxu0
    %v705 = vadd.f32 %v630, %v704
    %v706 = vpop.f32.mrb[0].mxu0
    %707 = vmatprep.mubr.f32.mxu0 %v423
    %708 = vmatmul.mubr.f32.gmra.mrb[0].mxu0 %v422
    %v709 = vpop.f32.mrb[0].mxu0
    %v710 = vadd.f32 %v635, %v709
    %v711 = vpop.f32.mrb[0].mxu0
    %712 = vdwg.mxu0
    %713 = vmatprep.subr.mxu0 0.0
    %714 = vmatpush1.msra.mxu0 %v492
    %715 = vmatprep.subr.mxu0 0.0
    %716 = vmatpush1.msra.mxu0 %v493
    %717 = vmatprep.subr.mxu0 0.0
    %718 = vmatpush1.msra.mxu0 %v494
    %719 = vmatprep.subr.mxu0 0.0
    %720 = vmatpush1.msra.mxu0 %v495
    %721 = vmatprep.subr.mxu0 0.0
    %722 = vmatpush1.msra.mxu0 %v496
    %723 = vmatprep.subr.mxu0 0.0
    %724 = vmatpush1.msra.mxu0 %v497
    %725 = vmatprep.subr.mxu0 0.0
    %726 = vmatpush1.msra.mxu0 %v498
    %727 = vmatprep.subr.mxu0 0.0
    %728 = vmatpush1.msra.mxu0 %v499
    %729 = vmatprep.subr.mxu0 0.0
    %730 = vmatpush1.msra.mxu0 %v500
    %731 = vmatprep.subr.mxu0 0.0
    %732 = vmatpush1.msra.mxu0 %v501
    %733 = vmatprep.subr.mxu0 0.0
    %734 = vmatpush1.msra.mxu0 %v502
    %735 = vmatprep.subr.mxu0 0.0
    %736 = vmatpush1.msra.mxu0 %v503
    %737 = vmatprep.subr.mxu0 0.0
    %738 = vmatpush1.msra.mxu0 %v504
    %739 = vmatprep.subr.mxu0 0.0
    %740 = vmatpush1.msra.mxu0 %v505
    %741 = vmatprep.subr.mxu0 0.0
    %742 = vmatpush1.msra.mxu0 %v506
    %743 = vmatprep.subr.mxu0 0.0
    %744 = vmatpush1.msra.mxu0 %v507
    %745 = vmatprep.subr.mxu0 0.0
    %746 = vmatpush1.msra.mxu0 %v508
    %747 = vmatprep.subr.mxu0 0.0
    %748 = vmatpush1.msra.mxu0 %v509
    %749 = vmatprep.subr.mxu0 0.0
    %750 = vmatpush1.msra.mxu0 %v510
    %751 = vmatprep.subr.mxu0 0.0
    %752 = vmatpush1.msra.mxu0 %v511
    %753 = vmatprep.subr.mxu0 0.0
    %754 = vmatpush1.msra.mxu0 %v512
    %755 = vmatprep.subr.mxu0 0.0
    %756 = vmatpush1.msra.mxu0 %v513
    %757 = vmatprep.subr.mxu0 0.0
    %758 = vmatpush1.msra.mxu0 %v514
    %759 = vmatprep.subr.mxu0 0.0
    %760 = vmatpush1.msra.mxu0 %v515
    %761 = vmatprep.subr.mxu0 0.0
    %762 = vmatpush1.msra.mxu0 %v516
    %763 = vmatprep.subr.mxu0 0.0
    %764 = vmatpush1.msra.mxu0 %v517
    %765 = vmatprep.subr.mxu0 0.0
    %766 = vmatpush1.msra.mxu0 %v518
    %767 = vmatprep.subr.mxu0 0.0
    %768 = vmatpush1.msra.mxu0 %v519
    %769 = vmatprep.subr.mxu0 0.0
    %770 = vmatpush1.msra.mxu0 %v520
    %771 = vmatprep.subr.mxu0 0.0
    %772 = vmatpush1.msra.mxu0 %v521
    %773 = vmatprep.subr.mxu0 0.0
    %774 = vmatpush1.msra.mxu0 %v522
    %775 = vmatprep.subr.mxu0 0.0
    %776 = vmatpush1.msra.mxu0 %v523
    %777 = vmatprep.mubr.f32.mxu0 %v417
    %778 = vmatmul.mubr.f32.gmra.mrb[0].mxu0 %v416
    %v779 = vpop.f32.mrb[0].mxu0
    %v780 = vadd.f32 %v705, %v779
    %v781 = vpop.f32.mrb[0].mxu0
    %782 = vmatprep.mubr.f32.mxu0 %v425
    %783 = vmatmul.mubr.f32.gmra.mrb[0].mxu0 %v424
    %v784 = vpop.f32.mrb[0].mxu0
    %v785 = vadd.f32 %v710, %v784
    %v786 = vpop.f32.mrb[0].mxu0
    %787 = vdwg.mxu0
    %788 = vmatprep.subr.mxu0 0.0
    %789 = vmatpush1.msra.mxu0 %v524
    %790 = vmatprep.subr.mxu0 0.0
    %791 = vmatpush1.msra.mxu0 %v525
    %792 = vmatprep.subr.mxu0 0.0
    %793 = vmatpush1.msra.mxu0 %v526
    %794 = vmatprep.subr.mxu0 0.0
    %795 = vmatpush1.msra.mxu0 %v527
    %796 = vmatprep.subr.mxu0 0.0
    %797 = vmatpush1.msra.mxu0 %v528
    %798 = vmatprep.subr.mxu0 0.0
    %799 = vmatpush1.msra.mxu0 %v529
    %800 = vmatprep.subr.mxu0 0.0
    %801 = vmatpush1.msra.mxu0 %v530
    %802 = vmatprep.subr.mxu0 0.0
    %803 = vmatpush1.msra.mxu0 %v531
    %804 = vmatprep.subr.mxu0 0.0
    %805 = vmatpush1.msra.mxu0 %v532
    %806 = vmatprep.subr.mxu0 0.0
    %807 = vmatpush1.msra.mxu0 %v533
    %808 = vmatprep.subr.mxu0 0.0
    %809 = vmatpush1.msra.mxu0 %v534
    %810 = vmatprep.subr.mxu0 0.0
    %811 = vmatpush1.msra.mxu0 %v535
    %812 = vmatprep.subr.mxu0 0.0
    %813 = vmatpush1.msra.mxu0 %v536
    %814 = vmatprep.subr.mxu0 0.0
    %815 = vmatpush1.msra.mxu0 %v537
    %816 = vmatprep.subr.mxu0 0.0
    %817 = vmatpush1.msra.mxu0 %v538
    %818 = vmatprep.subr.mxu0 0.0
    %819 = vmatpush1.msra.mxu0 %v539
    %820 = vmatprep.subr.mxu0 0.0
    %821 = vmatpush1.msra.mxu0 %v540
    %822 = vmatprep.subr.mxu0 0.0
    %823 = vmatpush1.msra.mxu0 %v541
    %824 = vmatprep.subr.mxu0 0.0
    %825 = vmatpush1.msra.mxu0 %v542
    %826 = vmatprep.subr.mxu0 0.0
    %827 = vmatpush1.msra.mxu0 %v543
    %828 = vmatprep.subr.mxu0 0.0
    %829 = vmatpush1.msra.mxu0 %v544
    %830 = vmatprep.subr.mxu0 0.0
    %831 = vmatpush1.msra.mxu0 %v545
    %832 = vmatprep.subr.mxu0 0.0
    %833 = vmatpush1.msra.mxu0 %v546
    %834 = vmatprep.subr.mxu0 0.0
    %835 = vmatpush1.msra.mxu0 %v547
    %836 = vmatprep.subr.mxu0 0.0
    %837 = vmatpush1.msra.mxu0 %v548
    %838 = vmatprep.subr.mxu0 0.0
    %839 = vmatpush1.msra.mxu0 %v549
    %840 = vmatprep.subr.mxu0 0.0
    %841 = vmatpush1.msra.mxu0 %v550
    %842 = vmatprep.subr.mxu0 0.0
    %843 = vmatpush1.msra.mxu0 %v551
    %844 = vmatprep.subr.mxu0 0.0
    %845 = vmatpush1.msra.mxu0 %v552
    %846 = vmatprep.subr.mxu0 0.0
    %847 = vmatpush1.msra.mxu0 %v553
    %848 = vmatprep.subr.mxu0 0.0
    %849 = vmatpush1.msra.mxu0 %v554
    %850 = vmatprep.subr.mxu0 0.0
    %851 = vmatpush1.msra.mxu0 %v555
    %852 = vmatprep.mubr.f32.mxu0 %v419
    %853 = vmatmul.mubr.f32.gmra.mrb[0].mxu0 %v418
    %v854 = vpop.f32.mrb[0].mxu0
    %v855 = vadd.f32 %v780, %v854
    %v856 = vpop.f32.mrb[0].mxu0
    %857 = vmatprep.mubr.f32.mxu0 %v427
    %858 = vmatmul.mubr.f32.gmra.mrb[0].mxu0 %v426
    %v859 = vpop.f32.mrb[0].mxu0
    %v860 = vadd.f32 %v785, %v859
    %v861 = vpop.f32.mrb[0].mxu0
    %862 = vdwg.mxu0
    %863 = vst.msk [vmem:[#allocation2] sm:$0xff] %vm97, %v855
    %864 = vst.msk [vmem:[#allocation2 + $0x8] sm:$0xff] %vm97, %v860
    // Predicated region
    $region22: #{feed_forward.1} parent=1 // pred_check
      _
    $region23: #{feed_forward.1} parent=1 // pred_check_branch
      %866 = sbr.rel (0) target = $region25
    $region24: #{feed_forward.1} parent=1 // pred_region
      %s868 = ssub.s32 256, 256
      %869 = vsyncadd [#allocation3], %s868
      %s870 = sshll.u32 [#allocation2], 4
      %s871 = int_to_ptr.vmem [resolvable:$true] %s870
      %876 = dma.vmem_to_hbm [thread:$0]  %s871, 256, %s5, [#allocation3], 128, 128, 8
    $region25: #{feed_forward.1} parent=1 // pred_fallthru
      _
    // Predicated region
    $region26: #{feed_forward.1} parent=1 // pred_check
      _
    $region27: #{feed_forward.1} parent=1 // pred_check_branch
      %878 = sbr.rel (0) target = $region29
    $region28: #{feed_forward.1} parent=1 // pred_region
      %879 = dma.done [#allocation3], 256
    $region29: #{feed_forward.1} parent=1 // pred_fallthru
      _
    %880 = vsyncpa [#allocation3], 1

</llo_original>
